<compile_context>
chip_gen: v6e
topology: v6e:2x2x1
jax: 0.10.0
libtpu: 0.0.40
codegen_flags: <defaults>
</compile_context>

<pallas_src>
import functools

import jax
import jax.numpy as jnp
from jax.experimental import pallas as pl
from jax.experimental.pallas import tpu as pltpu


def _round_up(x: int, m: int) -> int:
    return ((x + m - 1) // m) * m


def _pad_dim(dim: int) -> int:
    """Pad a lane-mapped dim: 128-aligned if small, 256-aligned otherwise."""
    if dim <= 128:
        return 128
    return _round_up(dim, 256)


def _pick_tile(dim_padded: int, default: int) -> int:
    """Largest tile <= default that divides the padded dim (128-multiples)."""
    for cand in (default, 1024, 768, 512, 384, 256, 128):
        if cand <= default and dim_padded % cand == 0:
            return cand
    return dim_padded


def _linear_kernel(x_ref, wt_ref, b_ref, o_ref, acc_ref):
    # x_ref:   (tm, tk)  bf16 activation tile
    # wt_ref:  (tk, tn)  bf16 pre-transposed weight tile (MXU-native RHS)
    # b_ref:   (1, tn)   f32 bias tile
    # o_ref:   (tm, tn)  output tile (x.dtype)
    # acc_ref: (tm, tn)  f32 VMEM accumulator scratch
    k = pl.program_id(2)

    @pl.when(k == 0)
    def _init():
        acc_ref[...] = jnp.zeros_like(acc_ref)

    acc_ref[...] += jnp.dot(
        x_ref[...], wt_ref[...], preferred_element_type=jnp.float32
    )

    @pl.when(k == pl.num_programs(2) - 1)
    def _finalize():
        # Bias added exactly once in f32, single fused cast to the output dtype.
        o_ref[...] = (acc_ref[...] + b_ref[...]).astype(o_ref.dtype)


def prepare_linear_params(w, b, compute_dtype=jnp.bfloat16):
    """One-time parameter prep: W.T, pad to tile-aligned dims, cast to bf16.

    w: (K, d), b: (K,).  Returns (wt_p, b_p) with
      wt_p: (dp, Kp) in compute_dtype, b_p: (1, Kp) in float32.
    Done once at init so no per-call HBM re-read/re-write of the weight.
    """
    K, d = w.shape
    Kp = _pad_dim(K)
    dp = _pad_dim(d)
    wt = w.T  # (d, K) — MXU-native RHS layout
    wt_p = jnp.pad(wt, ((0, dp - d), (0, Kp - K))).astype(compute_dtype)
    b_p = jnp.pad(b.reshape(1, K).astype(jnp.float32), ((0, 0), (0, Kp - K)))
    return wt_p, b_p


@functools.partial(jax.jit, static_argnames=("K", "tm", "tn", "tk"))
def linear_forward_prepared(x, wt_p, b_p, *, K, tm=512, tn=512, tk=1024):
    """Hot-path forward with pre-prepared weight.  Returns (N, K) in x.dtype."""
    N, d = x.shape
    dp, Kp = wt_p.shape
    assert d <= dp, "activation feature dim exceeds prepared weight dim"
    compute_dtype = wt_p.dtype
    out_dtype = x.dtype

    # --- Tile selection ---------------------------------------------------
    tm = min(tm, _round_up(N, 16))          # bf16 sublane packing => mult of 16
    tn = _pick_tile(Kp, tn)
    tk = _pick_tile(dp, tk)
    Np = _round_up(N, tm)

    # v7x has 2 TensorCores sharing the parallel grid axes: make sure there
    # are >= 2 (i, j) output tiles when the problem allows it.
    if Np // tm == 1 and Kp // tn == 1 and tn >= 256 and (Kp // 2) % 128 == 0:
        tn = Kp // 2

    # --- Activation: pad only when needed, cast to the compute dtype -------
    if (Np, dp) == (N, d):
        x_p = x.astype(compute_dtype)
    else:
        x_p = jnp.pad(x, ((0, Np - N), (0, dp - d))).astype(compute_dtype)

    grid = (Np // tm, Kp // tn, dp // tk)
    gi, gj, gk = grid

    in_bytes = jnp.dtype(compute_dtype).itemsize
    out_bytes = jnp.dtype(out_dtype).itemsize

    out_p = pl.pallas_call(
        _linear_kernel,
        out_shape=jax.ShapeDtypeStruct((Np, Kp), out_dtype),
        grid_spec=pltpu.PrefetchScalarGridSpec(
            num_scalar_prefetch=0,
            grid=grid,
            in_specs=[
                pl.BlockSpec((tm, tk), lambda i, j, k: (i, k)),   # X tile
                pl.BlockSpec((tk, tn), lambda i, j, k: (k, j)),   # W^T tile
                pl.BlockSpec((1, tn), lambda i, j, k: (0, j)),    # bias tile
            ],
            out_specs=pl.BlockSpec((tm, tn), lambda i, j, k: (i, j)),
            scratch_shapes=[pltpu.VMEM((tm, tn), jnp.float32)],
        ),
        compiler_params=pltpu.CompilerParams(
            dimension_semantics=("parallel", "parallel", "arbitrary"),
        ),
        cost_estimate=pl.CostEstimate(
            flops=2 * Np * Kp * dp,
            transcendentals=0,
            bytes_accessed=(
                in_bytes * gj * Np * dp        # X re-streamed per j tile
                + in_bytes * gi * Kp * dp      # W re-streamed per i tile
                + out_bytes * Np * Kp          # output written once
                + 4 * gi * Kp                  # bias re-streamed per i tile
            ),
        ),
    )(x_p, wt_p, b_p)

    return out_p[:N, :K]


def linear_forward(x, w, b, **tile_kwargs):
    """Convenience one-shot forward: x @ w.T + b (x:(N,d), w:(K,d), b:(K,))."""
    wt_p, b_p = prepare_linear_params(w, b)
    return linear_forward_prepared(x, wt_p, b_p, K=w.shape[0], **tile_kwargs)


if __name__ == "__main__":
    root = jax.random.PRNGKey(0)
    k1, k2 = jax.random.split(root)

    def _ref(x, w, b):
        # Reference with the same bf16 input rounding, f32 accumulation.
        xb = x.astype(jnp.bfloat16).astype(jnp.float32)
        wb = w.astype(jnp.bfloat16).astype(jnp.float32)
        return (
            jnp.dot(xb, wb.T, precision=jax.lax.Precision.HIGHEST)
            + b.astype(jnp.float32)
        )

    # --- Case 1: module-docstring scale (N=32, d=16, K=8), single grid step --
    N, d, K = 32, 16, 8
    kx, kw, kb = jax.random.split(k1, 3)
    bound = 1.0 / jnp.sqrt(jnp.float32(d))
    w = jax.random.uniform(kw, (K, d), jnp.float32, -bound, bound)
    b = jax.random.uniform(kb, (K,), jnp.float32, -bound, bound)
    x = jax.random.normal(kx, (N, d), jnp.float32)

    y = jax.block_until_ready(linear_forward(x, w, b))
    assert y.shape == (N, K)
    assert jnp.allclose(y, _ref(x, w, b), atol=1e-3, rtol=1e-3)

    # --- Case 2: multi-step (i, j, k) grid + accumulator + bias-once epilogue,
    #     weight prepared once and reused across calls (hot-path API) ---------
    N2, d2, K2 = 64, 1152, 300
    kx2, kw2, kb2 = jax.random.split(k2, 3)
    bound2 = 1.0 / jnp.sqrt(jnp.float32(d2))
    w2 = jax.random.uniform(kw2, (K2, d2), jnp.float32, -bound2, bound2)
    b2 = jax.random.uniform(kb2, (K2,), jnp.float32, -bound2, bound2)
    x2 = jax.random.normal(kx2, (N2, d2), jnp.float32)

    wt2_p, b2_p = prepare_linear_params(w2, b2)   # once at "init"
    y2 = jax.block_until_ready(
        linear_forward_prepared(x2, wt2_p, b2_p, K=K2)
    )
    assert y2.shape == (N2, K2)
    assert jnp.allclose(y2, _ref(x2, w2, b2), atol=2e-3, rtol=2e-3)

    print("KERNEL_OK")
</pallas_src>

<mosaic_0001>
module attributes {stable_mosaic.version = 11 : i64} {
  func.func @_linear_kernel(%arg0: i32, %arg1: i32, %arg2: i32, %arg3: memref<32x128xbf16, #tpu.memory_space<vmem>>, %arg4: memref<128x128xbf16, #tpu.memory_space<vmem>>, %arg5: memref<1x128xf32, #tpu.memory_space<vmem>>, %arg6: memref<32x128xf32, #tpu.memory_space<vmem>>, %arg7: memref<32x128xf32, #tpu.memory_space<vmem>>) attributes {dimension_semantics = [#tpu.dimension_semantics<parallel>, #tpu.dimension_semantics<parallel>, #tpu.dimension_semantics<arbitrary>], iteration_bounds = array<i64: 1, 1, 1>, scalar_prefetch = 0 : i64, scratch_operands = 1 : i64, tpu.core_type = #tpu.core_type<tc>, window_params = [{transform_indices = @transform_0, window_bounds = array<i64: 32, 128>}, {transform_indices = @transform_1, window_bounds = array<i64: 128, 128>}, {transform_indices = @transform_2, window_bounds = array<i64: 1, 128>}, {transform_indices = @transform_3, window_bounds = array<i64: 32, 128>}]} {
    %c0_i32 = arith.constant 0 : i32
    %0 = arith.cmpi eq, %arg2, %c0_i32 : i32
    %1 = arith.extui %0 : i1 to i32
    %c0_i32_0 = arith.constant 0 : i32
    %2 = arith.cmpi ne, %1, %c0_i32_0 : i32
    scf.if %2 {
      %cst_10 = arith.constant 0.000000e+00 : f32
      %12 = vector.broadcast %cst_10 : f32 to vector<32x128xf32>
      %c0_11 = arith.constant 0 : index
      %c0_12 = arith.constant 0 : index
      %13 = vector.load %arg7[%c0_11, %c0_12] : memref<32x128xf32, #tpu.memory_space<vmem>>, vector<32x128xf32>
      tpu.vector_store %arg7[%c0_11, %c0_12], %12 {strides = array<i32>} : memref<32x128xf32, #tpu.memory_space<vmem>>, vector<32x128xf32>,
    } else {
    }
    %c0 = arith.constant 0 : index
    %c0_1 = arith.constant 0 : index
    %3 = vector.load %arg7[%c0, %c0_1] : memref<32x128xf32, #tpu.memory_space<vmem>>, vector<32x128xf32>
    %c0_2 = arith.constant 0 : index
    %c0_3 = arith.constant 0 : index
    %4 = vector.load %arg3[%c0_2, %c0_3] : memref<32x128xbf16, #tpu.memory_space<vmem>>, vector<32x128xbf16>
    %c0_4 = arith.constant 0 : index
    %c0_5 = arith.constant 0 : index
    %5 = vector.load %arg4[%c0_4, %c0_5] : memref<128x128xbf16, #tpu.memory_space<vmem>>, vector<128x128xbf16>
    %cst = arith.constant dense<0.000000e+00> : vector<32x128xf32>
    %6 = tpu.matmul %4, %5, %cst {dimension_numbers = #tpu.dot_dimension_numbers<[1], [0], [0], [1], [0, 0, 1, 1], [], []>} : vector<32x128xbf16>, vector<128x128xbf16>, vector<32x128xf32> -> vector<32x128xf32>
    %7 = arith.addf %3, %6 : vector<32x128xf32>
    %c0_6 = arith.constant 0 : index
    %c0_7 = arith.constant 0 : index
    %8 = vector.load %arg7[%c0_6, %c0_7] : memref<32x128xf32, #tpu.memory_space<vmem>>, vector<32x128xf32>
    tpu.vector_store %arg7[%c0_6, %c0_7], %7 {strides = array<i32>} : memref<32x128xf32, #tpu.memory_space<vmem>>, vector<32x128xf32>,
    %c0_i32_8 = arith.constant 0 : i32
    %9 = arith.cmpi eq, %arg2, %c0_i32_8 : i32
    %10 = arith.extui %9 : i1 to i32
    %c0_i32_9 = arith.constant 0 : i32
    %11 = arith.cmpi ne, %10, %c0_i32_9 : i32
    scf.if %11 {
      %c0_10 = arith.constant 0 : index
      %c0_11 = arith.constant 0 : index
      %12 = vector.load %arg7[%c0_10, %c0_11] : memref<32x128xf32, #tpu.memory_space<vmem>>, vector<32x128xf32>
      %c0_12 = arith.constant 0 : index
      %c0_13 = arith.constant 0 : index
      %13 = vector.load %arg5[%c0_12, %c0_13] : memref<1x128xf32, #tpu.memory_space<vmem>>, vector<1x128xf32>
      %14 = vector.broadcast %13 : vector<1x128xf32> to vector<32x128xf32>
      %15 = arith.addf %12, %14 : vector<32x128xf32>
      %c0_14 = arith.constant 0 : index
      %c0_15 = arith.constant 0 : index
      %16 = vector.load %arg6[%c0_14, %c0_15] : memref<32x128xf32, #tpu.memory_space<vmem>>, vector<32x128xf32>
      tpu.vector_store %arg6[%c0_14, %c0_15], %15 {strides = array<i32>} : memref<32x128xf32, #tpu.memory_space<vmem>>, vector<32x128xf32>,
    } else {
    }
    return
  }
  func.func @transform_0(%arg0: i32, %arg1: i32, %arg2: i32) -> (i32, i32) {
    %c0_i32 = arith.constant 0 : i32
    return %arg0, %arg2 : i32, i32
  }
  func.func @transform_1(%arg0: i32, %arg1: i32, %arg2: i32) -> (i32, i32) {
    %c0_i32 = arith.constant 0 : i32
    return %arg2, %arg1 : i32, i32
  }
  func.func @transform_2(%arg0: i32, %arg1: i32, %arg2: i32) -> (i32, i32) {
    %c0_i32 = arith.constant 0 : i32
    %c0_i32_0 = arith.constant 0 : i32
    return %c0_i32, %arg1 : i32, i32
  }
  func.func @transform_3(%arg0: i32, %arg1: i32, %arg2: i32) -> (i32, i32) {
    %c0_i32 = arith.constant 0 : i32
    return %arg0, %arg1 : i32, i32
  }
}

</mosaic_0001>

<llo_original>
// kernel: linear_forward_prepared.1
$region0: #{linear_forward_prepared.1}
  #allocation0 [shape = 'u32[]', space=smem, size = 0x4, offset = 0x4, fixed_abs, tag = 'smem constant byte address 0x4 - core index']
  #allocation1 [shape = 'u32[144,128]{1,0:T(1,128)}', space=vmem, size = 0x12000, scoped, tag = 'internal scratch']
  #allocation2 [shape = 'f32[32,128]{1,0:T(8,128)}', space=vmem, size = 0x4000, scoped, tag = 'scratch operand']
  %s0 = inlined_call_operand.vmem [shape: bf16[32,128], index: 0, kind: input, shape index: {}]
  %s1 = inlined_call_operand.vmem [shape: bf16[128,128], index: 1, kind: input, shape index: {}]
  %s2 = inlined_call_operand.vmem [shape: f32[1,128], index: 2, kind: input, shape index: {}]
  %s3 = inlined_call_operand.vmem [shape: f32[32,128], index: 3, kind: output, shape index: {}]
  %s4 = sld [smem:[#allocation0]]
  $region30: #{linear_forward_prepared.1} parent=0
    _
  %s6 = ssub.s32 1, %s4
  %s7 = scalar_select 0, %s6, %s4
  // Predicated region
  $region2: #{linear_forward_prepared.1} parent=0 // pred_check
    _
  $region3: #{linear_forward_prepared.1} parent=0 // pred_check_branch
    %9 = sbr.rel (0) target = $region5
  $region4: #{linear_forward_prepared.1} parent=0 // pred_region
    _
  $region5: #{linear_forward_prepared.1} parent=0 // pred_fallthru
    _
  // Predicated region
  $region6: #{linear_forward_prepared.1} parent=0 // pred_check
    _
  $region7: #{linear_forward_prepared.1} parent=0 // pred_check_branch
    %11 = sbr.rel (0) target = $region9
  $region8: #{linear_forward_prepared.1} parent=0 // pred_region
    _
  $region9: #{linear_forward_prepared.1} parent=0 // pred_fallthru
    _
  // Predicated region
  $region10: #{linear_forward_prepared.1} parent=0 // pred_check
    _
  $region11: #{linear_forward_prepared.1} parent=0 // pred_check_branch
    %13 = sbr.rel (0) target = $region13
  $region12: #{linear_forward_prepared.1} parent=0 // pred_region
    _
  $region13: #{linear_forward_prepared.1} parent=0 // pred_fallthru
    _
  %p15 = scmp.eq.s32.totalorder 0, 0
  // Predicated region
  $region14: #{linear_forward_prepared.1} parent=0 // pred_check
    %p16 = pneg %p15
  $region15: #{linear_forward_prepared.1} parent=0 // pred_check_branch
    %18 = sbr.rel (%p16) target = $region17
  $region16: #{linear_forward_prepared.1} parent=0 // pred_region
    %19 = vst [vmem:[#allocation2] sm:$0xff] 0.0
    %20 = vst [vmem:[#allocation2 + $0x8] sm:$0xff] 0.0
    %21 = vst [vmem:[#allocation2 + $0x10] sm:$0xff] 0.0
    %22 = vst [vmem:[#allocation2 + $0x18] sm:$0xff] 0.0
  $region17: #{linear_forward_prepared.1} parent=0 // pred_fallthru
    _
  %v23 = vld [vmem:[#allocation2] sm:$0xff]
  %v24 = vld [vmem:[#allocation2 + $0x8] sm:$0xff]
  %v25 = vld [vmem:[#allocation2 + $0x10] sm:$0xff]
  %v26 = vld [vmem:[#allocation2 + $0x18] sm:$0xff]
  %v27 = vld [vmem:[%s0] sm:$0xf]
  %v28 = vld [vmem:[%s0 + $0x4] sm:$0xf]
  %v29 = vld [vmem:[%s0 + $0x8] sm:$0xf]
  %v30 = vld [vmem:[%s0 + $0xc] sm:$0xf]
  %v31 = vld [vmem:[%s1] sm:$0xf]
  %v32 = vld [vmem:[%s1 + $0x4] sm:$0xf]
  %v33 = vld [vmem:[%s1 + $0x8] sm:$0xf]
  %v34 = vld [vmem:[%s1 + $0xc] sm:$0xf]
  %v35 = vld [vmem:[%s1 + $0x10] sm:$0xf]
  %v36 = vld [vmem:[%s1 + $0x14] sm:$0xf]
  %v37 = vld [vmem:[%s1 + $0x18] sm:$0xf]
  %v38 = vld [vmem:[%s1 + $0x1c] sm:$0xf]
  %v39 = vld [vmem:[%s1 + $0x20] sm:$0xf]
  %v40 = vld [vmem:[%s1 + $0x24] sm:$0xf]
  %v41 = vld [vmem:[%s1 + $0x28] sm:$0xf]
  %v42 = vld [vmem:[%s1 + $0x2c] sm:$0xf]
  %v43 = vld [vmem:[%s1 + $0x30] sm:$0xf]
  %v44 = vld [vmem:[%s1 + $0x34] sm:$0xf]
  %v45 = vld [vmem:[%s1 + $0x38] sm:$0xf]
  %v46 = vld [vmem:[%s1 + $0x3c] sm:$0xf]
  %v51 = vunpack.c.l.b16 %v27
  %v52 = vunpack.c.l.b16 %v28
  %v53 = vunpack.c.l.b16 %v29
  %v54 = vunpack.c.l.b16 %v30
  %v55 = vpack.c.b16 %v52, %v51
  %v56 = vpack.c.b16 %v54, %v53
  %v75 = vunpack.c.l.b16 %v31
  %v76 = vunpack.c.l.b16 %v32
  %v77 = vunpack.c.l.b16 %v33
  %v78 = vunpack.c.l.b16 %v34
  %v79 = vunpack.c.l.b16 %v35
  %v80 = vunpack.c.l.b16 %v36
  %v81 = vunpack.c.l.b16 %v37
  %v82 = vunpack.c.l.b16 %v38
  %v83 = vunpack.c.l.b16 %v39
  %v84 = vunpack.c.l.b16 %v40
  %v85 = vunpack.c.l.b16 %v41
  %v86 = vunpack.c.l.b16 %v42
  %v87 = vunpack.c.l.b16 %v43
  %v88 = vunpack.c.l.b16 %v44
  %v89 = vunpack.c.l.b16 %v45
  %v90 = vunpack.c.l.b16 %v46
  %v91 = vpack.c.b16 %v76, %v75
  %v92 = vpack.c.b16 %v78, %v77
  %v93 = vpack.c.b16 %v80, %v79
  %v94 = vpack.c.b16 %v82, %v81
  %v95 = vpack.c.b16 %v84, %v83
  %v96 = vpack.c.b16 %v86, %v85
  %v97 = vpack.c.b16 %v88, %v87
  %v98 = vpack.c.b16 %v90, %v89
  %107 = vmatprep.subr.bf16.mxu0 0
  %108 = vmatpush1.bf16.msra.mxu0 %v98
  %109 = vmatprep.subr.bf16.mxu0 0
  %110 = vmatpush1.bf16.msra.mxu0 %v97
  %111 = vmatprep.subr.bf16.mxu0 0
  %112 = vmatpush1.bf16.msra.mxu0 %v96
  %113 = vmatprep.subr.bf16.mxu0 0
  %114 = vmatpush1.bf16.msra.mxu0 %v95
  %115 = vmatprep.subr.bf16.mxu0 0
  %116 = vmatpush1.bf16.msra.mxu0 %v94
  %117 = vmatprep.subr.bf16.mxu0 0
  %118 = vmatpush1.bf16.msra.mxu0 %v93
  %119 = vmatprep.subr.bf16.mxu0 0
  %120 = vmatpush1.bf16.msra.mxu0 %v92
  %121 = vmatprep.subr.bf16.mxu0 0
  %122 = vmatpush1.bf16.msra.mxu0 %v91
  %123 = vmatprep.subr.bf16.mxu0 0
  %124 = vmatpush2.bf16.msra.mxu0 0
  %125 = vmatprep.subr.bf16.mxu0 0
  %126 = vmatpush2.bf16.msra.mxu0 0
  %127 = vmatprep.subr.bf16.mxu0 0
  %128 = vmatpush2.bf16.msra.mxu0 0
  %129 = vmatprep.subr.bf16.mxu0 0
  %130 = vmatpush2.bf16.msra.mxu0 0
  %131 = vmatprep.subr.bf16.mxu0 0
  %132 = vmatpush2.bf16.msra.mxu0 0
  %133 = vmatprep.subr.bf16.mxu0 0
  %134 = vmatpush2.bf16.msra.mxu0 0
  %135 = vmatprep.subr.bf16.mxu0 0
  %136 = vmatpush2.bf16.msra.mxu0 0
  %137 = vmatprep.subr.bf16.mxu0 0
  %138 = vmatpush2.bf16.msra.mxu0 0
  %139 = vmatprep.mubr.bf16.mxu0 0
  %140 = vmatmul.mubr.bf16.gmra.mxu0 %v55
  %v141 = vpop.f32.mrf.mxu0
  %v142 = vadd.f32 0.0, %v141
  %v143 = vpop.f32.mrf.mxu0
  %v144 = vpop.f32.mrf.mxu0
  %v145 = vadd.f32 0.0, %v144
  %v146 = vpop.f32.mrf.mxu0
  %147 = vmatprep.mubr.bf16.mxu0 0
  %148 = vmatmul.mubr.bf16.gmra.mxu0 %v56
  %v149 = vpop.f32.mrf.mxu0
  %v150 = vadd.f32 0.0, %v149
  %v151 = vpop.f32.mrf.mxu0
  %v152 = vpop.f32.mrf.mxu0
  %v153 = vadd.f32 0.0, %v152
  %v154 = vpop.f32.mrf.mxu0
  %155 = vdwg.mxu0
  %v156 = vadd.f32 %v23, %v142
  %v157 = vadd.f32 %v24, %v145
  %v158 = vadd.f32 %v25, %v150
  %v159 = vadd.f32 %v26, %v153
  %160 = vst [vmem:[#allocation2] sm:$0xff] %v156
  %161 = vst [vmem:[#allocation2 + $0x8] sm:$0xff] %v157
  %162 = vst [vmem:[#allocation2 + $0x10] sm:$0xff] %v158
  %163 = vst [vmem:[#allocation2 + $0x18] sm:$0xff] %v159
  // Predicated region
  $region18: #{linear_forward_prepared.1} parent=0 // pred_check
    %p164 = pneg %p15
  $region19: #{linear_forward_prepared.1} parent=0 // pred_check_branch
    %166 = sbr.rel (%p164) target = $region21
  $region20: #{linear_forward_prepared.1} parent=0 // pred_region
    %v167 = vld [vmem:[#allocation2] sm:$0xff]
    %v168 = vld [vmem:[#allocation2 + $0x8] sm:$0xff]
    %v169 = vld [vmem:[#allocation2 + $0x10] sm:$0xff]
    %v170 = vld [vmem:[#allocation2 + $0x18] sm:$0xff]
    %v171 = vld [vmem:[%s2] sm:$0x1]
    %v173 = vlaneseq
    %v174 = vshrl.u32 %v173, 7
    %v175 = vsub.s32 0, %v174
    %v176 = vrot.slane %v171, %v175
    %v178 = vadd.f32 %v167, %v176
    %v179 = vadd.f32 %v168, %v176
    %v180 = vadd.f32 %v169, %v176
    %v181 = vadd.f32 %v170, %v176
    %182 = vst [vmem:[%s3] sm:$0xff] %v178
    %183 = vst [vmem:[%s3 + $0x8] sm:$0xff] %v179
    %184 = vst [vmem:[%s3 + $0x10] sm:$0xff] %v180
    %185 = vst [vmem:[%s3 + $0x18] sm:$0xff] %v181
  $region21: #{linear_forward_prepared.1} parent=0 // pred_fallthru
    _
  // Predicated region
  $region22: #{linear_forward_prepared.1} parent=0 // pred_check
    _
  $region23: #{linear_forward_prepared.1} parent=0 // pred_check_branch
    %187 = sbr.rel (0) target = $region25
  $region24: #{linear_forward_prepared.1} parent=0 // pred_region
    _
  $region25: #{linear_forward_prepared.1} parent=0 // pred_fallthru
    _
  // Predicated region
  $region26: #{linear_forward_prepared.1} parent=0 // pred_check
    _
  $region27: #{linear_forward_prepared.1} parent=0 // pred_check_branch
    %189 = sbr.rel (0) target = $region29
  $region28: #{linear_forward_prepared.1} parent=0 // pred_region
    _
  $region29: #{linear_forward_prepared.1} parent=0 // pred_fallthru
    _

</llo_original>
